<compile_context>
chip_gen: v6e
topology: v6e:2x2x1
jax: 0.10.0
libtpu: 0.0.40
codegen_flags: <defaults>
</compile_context>

<pallas_src>
import functools

import numpy as np
import jax
import jax.numpy as jnp
from jax.experimental import pallas as pl
from jax.experimental.pallas import tpu as pltpu


# ------------------------------------------------------------------------------------
# Reference-only helper (plain JAX): channel repeat + PixelShuffle(2), exactly as torch.
# Used only for validation in __main__; the kernel path never materializes this tensor.
# ------------------------------------------------------------------------------------
def repeat_and_pixel_shuffle(x_nchw):
    n, c, h, w = x_nchw.shape
    r = 2
    x4 = jnp.tile(x_nchw, (1, 4, 1, 1))              # (N, 4C, H, W)
    x4 = x4.reshape(n, c, r, r, h, w)                # (N, C, r, r, H, W)
    x4 = jnp.transpose(x4, (0, 1, 4, 2, 5, 3))       # (N, C, H, r, W, r)
    return x4.reshape(n, c, h * r, w * r)            # (N, C, 2H, 2W)


# ------------------------------------------------------------------------------------
# Sub-pixel geometry + weight folding
# ------------------------------------------------------------------------------------
def _subpixel_geometry(k):
    """Low-res tap offset range for the sub-pixel decomposition of a k x k same-pad conv."""
    p = (k - 1) // 2
    dmin = (0 - p) // 2                 # floor((phase 0 + tap 0 - p) / 2)
    dmax = (1 + (k - 1) - p) // 2       # floor((phase 1 + tap k-1 - p) / 2)
    keff = dmax - dmin + 1
    return p, dmin, dmax, keff


def _fold_weights(weight_oihw):
    """Fold repeat(1,4,1,1) + PixelShuffle(2) + Conv2d into one matmul weight.

    Returns w_flat (4*Cout, keff*keff*Cin):
      row m = (phase_y*2 + phase_x)*Cout + co
      col   = (dyi*keff + dxi)*Cin + c_src
    One einsum against a static 0/1 routing tensor (built host-side in numpy from shapes
    only), so the fold traces to a handful of ops instead of k*k scatter matmuls.
    """
    cout, cin, k, _ = weight_oihw.shape
    p, dmin, dmax, keff = _subpixel_geometry(k)
    route = np.zeros((4, k, k, cin, keff, keff, cin), np.float32)
    for ay in range(2):
        for ax in range(2):
            ph = ay * 2 + ax
            for kh in range(k):
                t = ay + kh - p
                a, dy = t % 2, t // 2            # python floor semantics
                for kw in range(k):
                    u = ax + kw - p
                    b, dx = u % 2, u // 2
                    for ci in range(cin):
                        # Upsampled channel ci at sub-pixel parity (a, b) reads low-res
                        # channel (4*ci + 2*a + b) % Cin  (== repeat(1,4,1,1)+PixelShuffle(2)).
                        csrc = (4 * ci + 2 * a + b) % cin
                        route[ph, kh, kw, ci, dy - dmin, dx - dmin, csrc] += 1.0
    w_eff = jnp.einsum("oikl,pklidec->pdeoc",
                       weight_oihw.astype(jnp.float32), jnp.asarray(route))
    return jnp.transpose(w_eff, (0, 3, 1, 2, 4)).reshape(4 * cout, keff * keff * cin)


# ------------------------------------------------------------------------------------
# Pallas kernel
# ------------------------------------------------------------------------------------
def _make_kernel(cin, keff, wp, th, rows):
    lanes = th * wp

    def kernel(slab_ref, w_ref, b_ref, o_ref, patch_ref):
        # Stage the im2col patch matrix with full-lane-width copies: the window for tap
        # (dyi, dxi) is the flat slab shifted by dyi*Wp + dxi lanes (no per-row slicing, no
        # reshape).  Lanes whose column lands in [W, Wp) are junk and dropped in the wrapper.
        slab = slab_ref[0, 0, :, :]                              # (Cin, SLAB_LEN)
        for dyi in range(keff):
            for dxi in range(keff):
                r0 = (dyi * keff + dxi) * cin
                off = dyi * wp + dxi
                patch_ref[r0:r0 + cin, :] = slab[:, off:off + lanes]
        # One MXU matmul per tile, f32 accumulate, plus the bias broadcast.
        y = jnp.dot(w_ref[...], patch_ref[...], preferred_element_type=jnp.float32)
        y = y + b_ref[...]                                       # (rows, 1) broadcast
        o_ref[...] = y.reshape(1, 1, rows, lanes).astype(o_ref.dtype)

    return kernel


def _pick_row_tile(n, h, c, cout, keff, wp):
    """Pick TH (low-res output rows per grid step).

    Targets ~2048 output lanes (TH*Wp) per step to amortize per-step pipeline overhead,
    prefers >=2 grid steps when batch==1 (v7x has 2 TensorCores sharing a parallel grid),
    and keeps the per-step VMEM footprint (2x slab + 2x output double-buffer + patch +
    resident weights) under ~12 MiB so it fits every generation's default scoped VMEM limit.
    """
    rows = -(-(4 * cout) // 8) * 8
    kdim = keff * keff * c

    def up8(v):
        return -(-v // 8) * 8

    th = up8(max(8, 2048 // wp))
    th = min(th, up8(h))
    if n == 1 and th >= h and h > 8:          # ensure a >=2 step grid for 2-TC chips
        th = up8((h + 1) // 2)

    def vmem_bytes(t):
        lanes = t * wp
        slab = c * (t + keff) * wp
        return 4 * (2 * slab + 2 * rows * lanes + kdim * lanes + rows * (kdim + 1))

    while th > 8 and vmem_bytes(th) > (12 << 20):
        th -= 8
    return th


@functools.partial(jax.jit, static_argnames=("row_tile",))
def upsample_conv_forward(x_nchw, weight_oihw, bias, row_tile=None):
    """Equivalent of UpsampleConv.forward: (N, C, H, W) -> (N, Cout, 2H, 2W)."""
    n, c, h, w = x_nchw.shape
    cout, cin, k, k2 = weight_oihw.shape
    assert cin == c and k == k2 and k % 2 == 1, "expects odd square kernel, Cin == n_input"

    _, dmin, dmax, keff = _subpixel_geometry(k)
    wp = w + keff - 1                       # padded low-res width (x halo)
    kdim = keff * keff * c                  # im2col contraction dim
    rows = -(-(4 * cout) // 8) * 8          # packed output rows, padded to sublane (8), not 128

    th = row_tile if row_tile is not None else _pick_row_tile(n, h, c, cout, keff, wp)
    nt = -(-h // th)                        # ragged H handled by padding (no divisibility req)
    h_t = nt * th
    lanes = th * wp
    slab_len = (th + keff) * wp             # haloed rows + 1 slack row for the flat-slice taps

    # Folded weights (zero-padded rows) and bias column.
    w_flat = _fold_weights(weight_oihw)
    w_mat = jnp.zeros((rows, kdim), jnp.float32).at[:4 * cout].set(w_flat)
    b_mat = jnp.zeros((rows, 1), jnp.float32).at[:4 * cout, 0].set(
        jnp.tile(bias.astype(jnp.float32), 4))

    # Zero-pad only the small LOW-RES input (conv halo + tile rounding + 1 slack row), then
    # pre-slice into NON-overlapping haloed row slabs so the kernel input is a plain
    # BlockSpec operand that the Pallas pipeline auto double-buffers (no manual DMA).
    x_pad = jnp.pad(x_nchw.astype(jnp.float32),
                    ((0, 0), (0, 0),
                     (-dmin, dmax + (h_t - h) + 1), (-dmin, dmax)))
    x_flat = x_pad.reshape(n, c, (h_t + keff) * wp)
    slabs = jnp.stack(
        [x_flat[:, :, t * th * wp: t * th * wp + slab_len] for t in range(nt)], axis=1)

    kernel = _make_kernel(c, keff, wp, th, rows)
    y = pl.pallas_call(
        kernel,
        out_shape=jax.ShapeDtypeStruct((n, nt, rows, lanes), jnp.float32),
        grid=(n, nt),
        in_specs=[
            pl.BlockSpec((1, 1, c, slab_len), lambda b, t: (b, t, 0, 0)),   # haloed slab
            pl.BlockSpec((rows, kdim), lambda b, t: (0, 0)),                # folded weights
            pl.BlockSpec((rows, 1), lambda b, t: (0, 0)),                   # bias column
        ],
        out_specs=pl.BlockSpec((1, 1, rows, lanes), lambda b, t: (b, t, 0, 0)),
        scratch_shapes=[pltpu.VMEM((kdim, lanes), jnp.float32)],            # im2col patches
        compiler_params=pltpu.CompilerParams(
            dimension_semantics=("parallel", "parallel")),
    )(slabs, w_mat, b_mat)

    # Un-pack the 4 sub-pixel phases (one fused slice+transpose+reshape pass in XLA):
    #   row m = (ay*2+ax)*Cout + co, lane s = y*Wp + x  (columns x >= W are junk).
    y = y[:, :, :4 * cout, :].reshape(n, nt, 2, 2, cout, th, wp)[..., :w]
    y = jnp.transpose(y, (0, 4, 1, 5, 2, 6, 3))        # (n, co, tile, y, ay, x, ax)
    return y.reshape(n, cout, 2 * h_t, 2 * w)[:, :, :2 * h, :]


# ------------------------------------------------------------------------------------
# Deterministic Conv2d-style init (uniform +/- 1/sqrt(fan_in)), as in the torch module
# ------------------------------------------------------------------------------------
def init_params(key, n_input, n_output, k_size):
    kw, kb = jax.random.split(key)
    bound = 1.0 / np.sqrt(float(n_input * k_size * k_size))
    weight = jax.random.uniform(kw, (n_output, n_input, k_size, k_size),
                                jnp.float32, -bound, bound)
    bias = jax.random.uniform(kb, (n_output,), jnp.float32, -bound, bound)
    return weight, bias


def _reference(x, weight, bias, k):
    up = repeat_and_pixel_shuffle(x)
    p = (k - 1) // 2
    return jax.lax.conv_general_dilated(
        up, weight, window_strides=(1, 1), padding=[(p, p), (p, p)],
        dimension_numbers=("NCHW", "OIHW", "NCHW")) + bias[None, :, None, None]


if __name__ == "__main__":
    key = jax.random.PRNGKey(0)
    k1, k2, k3, k4 = jax.random.split(key, 4)

    # Test 1: the module's natural small config -- batch=2, channels=4, spatial=16, k=3.
    # row_tile=8 -> grid (2, 2), exercising the multi-tile (haloed slab) path.
    x = jax.random.normal(k1, (2, 4, 16, 16), jnp.float32)
    weight, bias = init_params(k2, 4, 8, 3)
    out = jax.block_until_ready(upsample_conv_forward(x, weight, bias, row_tile=8))
    assert out.shape == (2, 8, 32, 32), out.shape
    err = float(jnp.abs(out - _reference(x, weight, bias, 3)).max())
    assert err < 2e-3, f"test1 max abs err {err}"

    # Test 2 (covers the review's correctness concerns): k=5, Cin=8, odd Cout (row padding),
    # ragged H=13 (padded tail tile), batch=1 with two row tiles.
    x2 = jax.random.normal(k3, (1, 8, 13, 16), jnp.float32)
    weight2, bias2 = init_params(k4, 8, 5, 5)
    out2 = jax.block_until_ready(upsample_conv_forward(x2, weight2, bias2, row_tile=8))
    assert out2.shape == (1, 5, 26, 32), out2.shape
    err2 = float(jnp.abs(out2 - _reference(x2, weight2, bias2, 5)).max())
    assert err2 < 2e-3, f"test2 max abs err {err2}"

    print("KERNEL_OK")
</pallas_src>

<mosaic_0001>
module attributes {stable_mosaic.version = 11 : i64} {
  func.func @kernel(%arg0: i32, %arg1: i32, %arg2: memref<1x1x4x198xf32, #tpu.memory_space<vmem>>, %arg3: memref<32x36xf32, #tpu.memory_space<vmem>>, %arg4: memref<32x1xf32, #tpu.memory_space<vmem>>, %arg5: memref<1x1x32x144xf32, #tpu.memory_space<vmem>>, %arg6: memref<36x144xf32, #tpu.memory_space<vmem>>) attributes {dimension_semantics = [#tpu.dimension_semantics<parallel>, #tpu.dimension_semantics<parallel>], iteration_bounds = array<i64: 2, 2>, scalar_prefetch = 0 : i64, scratch_operands = 1 : i64, tpu.core_type = #tpu.core_type<tc>, window_params = [{transform_indices = @transform_0, window_bounds = array<i64: 1, 1, 4, 198>}, {pipeline_mode = #tpu.pipeline_mode<synchronous>, transform_indices = @transform_1, window_bounds = array<i64: 32, 36>}, {pipeline_mode = #tpu.pipeline_mode<synchronous>, transform_indices = @transform_2, window_bounds = array<i64: 32, 1>}, {transform_indices = @transform_3, window_bounds = array<i64: 1, 1, 32, 144>}]} {
    %c0 = arith.constant 0 : index
    %c0_0 = arith.constant 0 : index
    %c0_1 = arith.constant 0 : index
    %c0_2 = arith.constant 0 : index
    %0 = vector.load %arg2[%c0, %c0_0, %c0_1, %c0_2] : memref<1x1x4x198xf32, #tpu.memory_space<vmem>>, vector<1x1x4x198xf32>
    %1 = vector.shape_cast %0 : vector<1x1x4x198xf32> to vector<4x198xf32>
    %2 = vector.extract_strided_slice %1 {offsets = [0, 0], sizes = [4, 144], strides = [1, 1]} : vector<4x198xf32> to vector<4x144xf32>
    %c0_3 = arith.constant 0 : index
    %c0_4 = arith.constant 0 : index
    %3 = vector.load %arg6[%c0_3, %c0_4] : memref<36x144xf32, #tpu.memory_space<vmem>>, vector<4x144xf32>
    tpu.vector_store %arg6[%c0_3, %c0_4], %2 {strides = array<i32>} : memref<36x144xf32, #tpu.memory_space<vmem>>, vector<4x144xf32>,
    %4 = vector.extract_strided_slice %1 {offsets = [0, 1], sizes = [4, 144], strides = [1, 1]} : vector<4x198xf32> to vector<4x144xf32>
    %c4 = arith.constant 4 : index
    %c0_5 = arith.constant 0 : index
    %5 = vector.load %arg6[%c4, %c0_5] : memref<36x144xf32, #tpu.memory_space<vmem>>, vector<4x144xf32>
    tpu.vector_store %arg6[%c4, %c0_5], %4 {strides = array<i32>} : memref<36x144xf32, #tpu.memory_space<vmem>>, vector<4x144xf32>,
    %6 = vector.extract_strided_slice %1 {offsets = [0, 2], sizes = [4, 144], strides = [1, 1]} : vector<4x198xf32> to vector<4x144xf32>
    %c8 = arith.constant 8 : index
    %c0_6 = arith.constant 0 : index
    %7 = vector.load %arg6[%c8, %c0_6] : memref<36x144xf32, #tpu.memory_space<vmem>>, vector<4x144xf32>
    tpu.vector_store %arg6[%c8, %c0_6], %6 {strides = array<i32>} : memref<36x144xf32, #tpu.memory_space<vmem>>, vector<4x144xf32>,
    %8 = vector.extract_strided_slice %1 {offsets = [0, 18], sizes = [4, 144], strides = [1, 1]} : vector<4x198xf32> to vector<4x144xf32>
    %c12 = arith.constant 12 : index
    %c0_7 = arith.constant 0 : index
    %9 = vector.load %arg6[%c12, %c0_7] : memref<36x144xf32, #tpu.memory_space<vmem>>, vector<4x144xf32>
    tpu.vector_store %arg6[%c12, %c0_7], %8 {strides = array<i32>} : memref<36x144xf32, #tpu.memory_space<vmem>>, vector<4x144xf32>,
    %10 = vector.extract_strided_slice %1 {offsets = [0, 19], sizes = [4, 144], strides = [1, 1]} : vector<4x198xf32> to vector<4x144xf32>
    %c16 = arith.constant 16 : index
    %c0_8 = arith.constant 0 : index
    %11 = vector.load %arg6[%c16, %c0_8] : memref<36x144xf32, #tpu.memory_space<vmem>>, vector<4x144xf32>
    tpu.vector_store %arg6[%c16, %c0_8], %10 {strides = array<i32>} : memref<36x144xf32, #tpu.memory_space<vmem>>, vector<4x144xf32>,
    %12 = vector.extract_strided_slice %1 {offsets = [0, 20], sizes = [4, 144], strides = [1, 1]} : vector<4x198xf32> to vector<4x144xf32>
    %c20 = arith.constant 20 : index
    %c0_9 = arith.constant 0 : index
    %13 = vector.load %arg6[%c20, %c0_9] : memref<36x144xf32, #tpu.memory_space<vmem>>, vector<4x144xf32>
    tpu.vector_store %arg6[%c20, %c0_9], %12 {strides = array<i32>} : memref<36x144xf32, #tpu.memory_space<vmem>>, vector<4x144xf32>,
    %14 = vector.extract_strided_slice %1 {offsets = [0, 36], sizes = [4, 144], strides = [1, 1]} : vector<4x198xf32> to vector<4x144xf32>
    %c24 = arith.constant 24 : index
    %c0_10 = arith.constant 0 : index
    %15 = vector.load %arg6[%c24, %c0_10] : memref<36x144xf32, #tpu.memory_space<vmem>>, vector<4x144xf32>
    tpu.vector_store %arg6[%c24, %c0_10], %14 {strides = array<i32>} : memref<36x144xf32, #tpu.memory_space<vmem>>, vector<4x144xf32>,
    %16 = vector.extract_strided_slice %1 {offsets = [0, 37], sizes = [4, 144], strides = [1, 1]} : vector<4x198xf32> to vector<4x144xf32>
    %c28 = arith.constant 28 : index
    %c0_11 = arith.constant 0 : index
    %17 = vector.load %arg6[%c28, %c0_11] : memref<36x144xf32, #tpu.memory_space<vmem>>, vector<4x144xf32>
    tpu.vector_store %arg6[%c28, %c0_11], %16 {strides = array<i32>} : memref<36x144xf32, #tpu.memory_space<vmem>>, vector<4x144xf32>,
    %18 = vector.extract_strided_slice %1 {offsets = [0, 38], sizes = [4, 144], strides = [1, 1]} : vector<4x198xf32> to vector<4x144xf32>
    %c32 = arith.constant 32 : index
    %c0_12 = arith.constant 0 : index
    %19 = vector.load %arg6[%c32, %c0_12] : memref<36x144xf32, #tpu.memory_space<vmem>>, vector<4x144xf32>
    tpu.vector_store %arg6[%c32, %c0_12], %18 {strides = array<i32>} : memref<36x144xf32, #tpu.memory_space<vmem>>, vector<4x144xf32>,
    %c0_13 = arith.constant 0 : index
    %c0_14 = arith.constant 0 : index
    %20 = vector.load %arg3[%c0_13, %c0_14] : memref<32x36xf32, #tpu.memory_space<vmem>>, vector<32x36xf32>
    %c0_15 = arith.constant 0 : index
    %c0_16 = arith.constant 0 : index
    %21 = vector.load %arg6[%c0_15, %c0_16] : memref<36x144xf32, #tpu.memory_space<vmem>>, vector<36x144xf32>
    %cst = arith.constant dense<0.000000e+00> : vector<32x144xf32>
    %22 = tpu.matmul %20, %21, %cst {dimension_numbers = #tpu.dot_dimension_numbers<[1], [0], [0], [1], [0, 0, 1, 1], [], []>} : vector<32x36xf32>, vector<36x144xf32>, vector<32x144xf32> -> vector<32x144xf32>
    %c0_17 = arith.constant 0 : index
    %c0_18 = arith.constant 0 : index
    %23 = vector.load %arg4[%c0_17, %c0_18] : memref<32x1xf32, #tpu.memory_space<vmem>>, vector<32x1xf32>
    %24 = vector.broadcast %23 : vector<32x1xf32> to vector<32x144xf32>
    %25 = arith.addf %22, %24 : vector<32x144xf32>
    %26 = vector.shape_cast %25 : vector<32x144xf32> to vector<1x1x32x144xf32>
    %c0_19 = arith.constant 0 : index
    %c0_20 = arith.constant 0 : index
    %c0_21 = arith.constant 0 : index
    %c0_22 = arith.constant 0 : index
    %27 = vector.load %arg5[%c0_19, %c0_20, %c0_21, %c0_22] : memref<1x1x32x144xf32, #tpu.memory_space<vmem>>, vector<1x1x32x144xf32>
    tpu.vector_store %arg5[%c0_19, %c0_20, %c0_21, %c0_22], %26 {strides = array<i32>} : memref<1x1x32x144xf32, #tpu.memory_space<vmem>>, vector<1x1x32x144xf32>,
    return
  }
  func.func @transform_0(%arg0: i32, %arg1: i32) -> (i32, i32, i32, i32) {
    %c0_i32 = arith.constant 0 : i32
    %c0_i32_0 = arith.constant 0 : i32
    %c0_i32_1 = arith.constant 0 : i32
    return %arg0, %arg1, %c0_i32, %c0_i32_0 : i32, i32, i32, i32
  }
  func.func @transform_1(%arg0: i32, %arg1: i32) -> (i32, i32) {
    %c0_i32 = arith.constant 0 : i32
    %c0_i32_0 = arith.constant 0 : i32
    %c0_i32_1 = arith.constant 0 : i32
    return %c0_i32, %c0_i32_0 : i32, i32
  }
  func.func @transform_2(%arg0: i32, %arg1: i32) -> (i32, i32) {
    %c0_i32 = arith.constant 0 : i32
    %c0_i32_0 = arith.constant 0 : i32
    %c0_i32_1 = arith.constant 0 : i32
    return %c0_i32, %c0_i32_0 : i32, i32
  }
  func.func @transform_3(%arg0: i32, %arg1: i32) -> (i32, i32, i32, i32) {
    %c0_i32 = arith.constant 0 : i32
    %c0_i32_0 = arith.constant 0 : i32
    %c0_i32_1 = arith.constant 0 : i32
    return %arg0, %arg1, %c0_i32, %c0_i32_0 : i32, i32, i32, i32
  }
}

</mosaic_0001>

<llo_original>
// kernel: tile.8
$region0: #{tile.8}
  #allocation0 [shape = 's32[1]{0}', space=sflag, size = 0x4, scoped, tag = 'scoped memory for tile.8']
  %s0 = inlined_call_operand.vmem [shape: f32[8], index: 0, kind: input, shape index: {}]
  %s1 = inlined_call_operand.vmem [shape: f32[4,8], index: 1, kind: output, shape index: {}]
  // Predicated region
  $region2: #{tile.8} parent=0 // pred_check
    _
  $region3: #{tile.8} parent=0 // pred_check_branch
    %3 = sbr.rel (0) target = $region5
  $region4: #{tile.8} parent=0 // pred_region
    _
  $region5: #{tile.8} parent=0 // pred_fallthru
    _
  %v4 = vld [vmem:[%s0] ss:$0 sm:$0xff]
  %5 = vst [vmem:[%s1] sm:$0xf] %v4

// kernel: upsample_conv_forward.1
$region0: #{upsample_conv_forward.1}
  #allocation0 [shape = 'u32[]', space=smem, size = 0x4, offset = 0x4, fixed_abs, tag = 'smem constant byte address 0x4 - core index']
  #allocation1 [shape = 'u32[144,128]{1,0:T(1,128)}', space=vmem, size = 0x12000, scoped, tag = 'internal scratch']
  #allocation2 [shape = 'f32[36,144]{1,0:T(8,128)}', space=vmem, size = 0xa000, scoped, tag = 'scratch operand']
  %s0 = inlined_call_operand.vmem [shape: f32[2,2,4,198], index: 0, kind: input, shape index: {}]
  %s1 = inlined_call_operand.vmem [shape: f32[32,36], index: 1, kind: input, shape index: {}]
  %s2 = inlined_call_operand.vmem [shape: f32[32,1], index: 2, kind: input, shape index: {}]
  %s3 = inlined_call_operand.vmem [shape: f32[2,2,32,144], index: 3, kind: output, shape index: {}]
  %s4 = sld [smem:[#allocation0]]
  $region45: #{upsample_conv_forward.1} parent=0
    _
  %s6 = ssub.s32 1, %s4
  %s7 = scalar_select 0, %s6, %s4
  loop: start=0, step=1, limit=6
  $region2: #{upsample_conv_forward.1} parent=0 // loop_pre_header
    _
  $region3: #{upsample_conv_forward.1} parent=0 // loop_header
    %s9 = sphi 0, %s13
    %p10 = scmp.ge.s32.totalorder %s9, 6
    %s16 = sphi 0, %s28
    %s17 = sphi 0, %s24
    %s18 = sphi 0, %s16
    %s19 = sphi 0, %s17
    %s20 = sphi 0, %s18
    %s21 = sphi 0, %s19
    %s33 = sphi 0, %s35
    %s36 = sphi 0, %s33
    %s37 = sphi 0, %s36
    %s53 = sphi 0, %s37
    %s57 = sphi 0, %s57
    %s59 = sphi 0, %s57
    %s60 = sphi 0, %s59
    %s74 = sphi 0, %s60
    %s78 = sphi 0, %s78
    %s80 = sphi 0, %s78
    %s81 = sphi 0, %s80
    %s95 = sphi 0, %s81
    %s103 = sphi 0, %s105
    %s106 = sphi 0, %s103
    %s107 = sphi 0, %s106
    %s123 = sphi 0, %s107
  $region4: #{upsample_conv_forward.1} parent=0 // loop_header_branch
    %12 = sbr.rel (%p10) target = $region8
  $region5: #{upsample_conv_forward.1} parent=0 // loop_body
    %s14 = ssub.s32 %s9, 1
    %s15 = ssub.s32 %s9, 2
    %s22 = sadd.s32 1, %s17
    %p23 = scmp.ge.s32.totalorder %s22, 2
    %s24 = scalar_select %p23, 0, %s22
    %s25 = sadd.s32 1, %s16
    %s26 = scalar_select %p23, %s25, %s16
    %p27 = scmp.ge.s32.totalorder %s26, 2
    %s28 = scalar_select %p27, 0, %s26
    %s29 = ssub.s32 %s16, %s28
    %s30 = ssub.s32 %s17, %s24
    %s31 = sor.u32 %s29, %s30
    %p32 = scmp.eq.s32.totalorder %s31, 0
    %s34 = sadd.s32 %s33, 1
    %s35 = scalar_select %p32, %s33, %s34
    %p38 = pneg %p32
    %p39 = scmp.eq.s32.totalorder %s9, 3
    %p40 = por %p38, %p39
    %p41 = scmp.ne.s32.totalorder %s33, %s36
    %p42 = scmp.eq.s32.totalorder %s9, 0
    %p43 = por %p41, %p42
    %p44 = scmp.ne.s32.totalorder %s33, %s36
    %p45 = scmp.eq.s32.totalorder %s14, 3
    %p46 = por %p44, %p45
    %p47 = scmp.ne.s32.totalorder %s36, %s37
    %p48 = scmp.eq.s32.totalorder %s14, 0
    %p49 = por %p47, %p48
    %p50 = scmp.ne.s32.totalorder %s36, %s37
    %p51 = scmp.eq.s32.totalorder %s15, 3
    %p52 = por %p50, %p51
    %p54 = scmp.ne.s32.totalorder %s37, %s53
    %p55 = scmp.eq.s32.totalorder %s15, 0
    %p56 = por %p54, %p55
    %s58 = sadd.s32 %s57, 1
    %p61 = scmp.eq.s32.totalorder %s9, 3
    %p62 = scmp.ne.s32.totalorder %s57, %s59
    %p63 = scmp.eq.s32.totalorder %s9, 0
    %p64 = por %p62, %p63
    %p65 = scmp.ne.s32.totalorder %s57, %s59
    %p66 = scmp.eq.s32.totalorder %s14, 3
    %p67 = por %p65, %p66
    %p68 = scmp.ne.s32.totalorder %s59, %s60
    %p69 = scmp.eq.s32.totalorder %s14, 0
    %p70 = por %p68, %p69
    %p71 = scmp.ne.s32.totalorder %s59, %s60
    %p72 = scmp.eq.s32.totalorder %s15, 3
    %p73 = por %p71, %p72
    %p75 = scmp.ne.s32.totalorder %s60, %s74
    %p76 = scmp.eq.s32.totalorder %s15, 0
    %p77 = por %p75, %p76
    %s79 = sadd.s32 %s78, 1
    %p82 = scmp.eq.s32.totalorder %s9, 3
    %p83 = scmp.ne.s32.totalorder %s78, %s80
    %p84 = scmp.eq.s32.totalorder %s9, 0
    %p85 = por %p83, %p84
    %p86 = scmp.ne.s32.totalorder %s78, %s80
    %p87 = scmp.eq.s32.totalorder %s14, 3
    %p88 = por %p86, %p87
    %p89 = scmp.ne.s32.totalorder %s80, %s81
    %p90 = scmp.eq.s32.totalorder %s14, 0
    %p91 = por %p89, %p90
    %p92 = scmp.ne.s32.totalorder %s80, %s81
    %p93 = scmp.eq.s32.totalorder %s15, 3
    %p94 = por %p92, %p93
    %p96 = scmp.ne.s32.totalorder %s81, %s95
    %p97 = scmp.eq.s32.totalorder %s15, 0
    %p98 = por %p96, %p97
    %s99 = ssub.s32 %s16, %s28
    %s100 = ssub.s32 %s17, %s24
    %s101 = sor.u32 %s99, %s100
    %p102 = scmp.eq.s32.totalorder %s101, 0
    %s104 = sadd.s32 %s103, 1
    %s105 = scalar_select %p102, %s103, %s104
    %p108 = pneg %p102
    %p109 = scmp.eq.s32.totalorder %s9, 3
    %p110 = por %p108, %p109
    %p111 = scmp.ne.s32.totalorder %s103, %s106
    %p112 = scmp.eq.s32.totalorder %s9, 0
    %p113 = por %p111, %p112
    %p114 = scmp.ne.s32.totalorder %s103, %s106
    %p115 = scmp.eq.s32.totalorder %s14, 3
    %p116 = por %p114, %p115
    %p117 = scmp.ne.s32.totalorder %s106, %s107
    %p118 = scmp.eq.s32.totalorder %s14, 0
    %p119 = por %p117, %p118
    %p120 = scmp.ne.s32.totalorder %s106, %s107
    %p121 = scmp.eq.s32.totalorder %s15, 3
    %p122 = por %p120, %p121
    %p124 = scmp.ne.s32.totalorder %s107, %s123
    %p125 = scmp.eq.s32.totalorder %s15, 0
    %p126 = por %p124, %p125
    %p127 = scmp.le.s32.totalorder 1, %s9
    %p128 = scmp.lt.s32.totalorder %s9, 5
    %p129 = pnand %p127, %p128
    %p130 = pneg %p129
    // Predicated region
    $region9: #{upsample_conv_forward.1} parent=5 // pred_check
      _
    $region10: #{upsample_conv_forward.1} parent=5 // pred_check_branch
      %132 = sbr.rel (%p129) target = $region12
    $region11: #{upsample_conv_forward.1} parent=5 // pred_region
      %s133 = ssub.s32 %s9, 1
      // Predicated region
      $region13: #{upsample_conv_forward.1} parent=11 // pred_check
        %p134 = pneg %p70
      $region14: #{upsample_conv_forward.1} parent=11 // pred_check_branch
        %136 = sbr.rel (%p134) target = $region16
      $region15: #{upsample_conv_forward.1} parent=11 // pred_region
        _
      $region16: #{upsample_conv_forward.1} parent=11 // pred_fallthru
        _
      // Predicated region
      $region17: #{upsample_conv_forward.1} parent=11 // pred_check
        %p137 = pneg %p91
      $region18: #{upsample_conv_forward.1} parent=11 // pred_check_branch
        %139 = sbr.rel (%p137) target = $region20
      $region19: #{upsample_conv_forward.1} parent=11 // pred_region
        _
      $region20: #{upsample_conv_forward.1} parent=11 // pred_fallthru
        _
    $region12: #{upsample_conv_forward.1} parent=5 // pred_fallthru
      _
    %p140 = scmp.lt.s32.totalorder %s9, 4
    // Predicated region
    $region21: #{upsample_conv_forward.1} parent=5 // pred_check
      %p141 = pneg %p140
    $region22: #{upsample_conv_forward.1} parent=5 // pred_check_branch
      %143 = sbr.rel (%p141) target = $region24
    $region23: #{upsample_conv_forward.1} parent=5 // pred_region
      // Predicated region
      $region25: #{upsample_conv_forward.1} parent=23 // pred_check
        %p144 = pneg %p43
      $region26: #{upsample_conv_forward.1} parent=23 // pred_check_branch
        %146 = sbr.rel (%p144) target = $region28
      $region27: #{upsample_conv_forward.1} parent=23 // pred_region
        %p147 = scmp.lt.s32.totalorder %s16, 1
        %s148 = scalar_select %p147, %s16, 1
        %p149 = scmp.lt.s32.totalorder %s17, 1
        %s150 = scalar_select %p149, %s17, 1
        %s151 = smul.addr %s150, 2
        %s152 = smul.addr %s148, 4
        %s153 = sadd.s32 %s151, %s152
        %s154 = smul.addr %s153, 4
        %s155 = scalar_lea.vmem %s0, %s154
      $region28: #{upsample_conv_forward.1} parent=23 // pred_fallthru
        _
    $region24: #{upsample_conv_forward.1} parent=5 // pred_fallthru
      _
    %p156 = scmp.le.s32.totalorder 1, %s9
    %p157 = scmp.lt.s32.totalorder %s9, 5
    %p158 = pnand %p156, %p157
    %p159 = pneg %p158
    // Predicated region
    $region29: #{upsample_conv_forward.1} parent=5 // pred_check
      _
    $region30: #{upsample_conv_forward.1} parent=5 // pred_check_branch
      %161 = sbr.rel (%p158) target = $region32
    $region31: #{upsample_conv_forward.1} parent=5 // pred_region
      %s162 = ssub.s32 %s9, 1
      %p163 = scmp.lt.s32.totalorder %s18, 1
      %s164 = scalar_select %p163, %s18, 1
      %p165 = scmp.lt.s32.totalorder %s19, 1
      %s166 = scalar_select %p165, %s19, 1
      %s167 = smul.addr %s166, 2
      %s168 = smul.addr %s164, 4
      %s169 = sadd.s32 %s167, %s168
      %s170 = smul.addr %s169, 4
      %s171 = scalar_lea.vmem %s0, %s170
      %p172 = pneg %p49
      %p173 = pneg %p46
      %p174 = pneg %p70
      %p175 = pneg %p67
      %p176 = pneg %p91
      %p177 = pneg %p88
      %p178 = pneg %p119
      %p179 = pneg %p116
      %p180 = scmp.lt.s32.totalorder %s18, 1
      %s181 = scalar_select %p180, %s18, 1
      %p182 = scmp.lt.s32.totalorder %s19, 1
      %s183 = scalar_select %p182, %s19, 1
      %s184 = smul.addr %s183, 8
      %s185 = smul.addr %s181, 16
      %s186 = sadd.s32 %s184, %s185
      %s187 = smul.addr %s186, 8
      %s188 = scalar_lea.vmem %s3, %s187
      %p189 = scmp.lt.s32.totalorder %s18, 1
      %s190 = scalar_select %p189, %s18, 1
      %p191 = scmp.lt.s32.totalorder %s19, 1
      %s192 = scalar_select %p191, %s19, 1
      %s193 = smul.addr %s192, 2
      %s194 = smul.addr %s190, 4
      %s195 = sadd.s32 %s193, %s194
      %s196 = smul.addr %s195, 4
      %s197 = scalar_lea.vmem %s0, %s196
      %p198 = scmp.lt.s32.totalorder %s18, 1
      %s199 = scalar_select %p198, %s18, 1
      %p200 = scmp.lt.s32.totalorder %s19, 1
      %s201 = scalar_select %p200, %s19, 1
      %s202 = smul.addr %s201, 8
      %s203 = smul.addr %s199, 16
      %s204 = sadd.s32 %s202, %s203
      %s205 = smul.addr %s204, 8
      %s206 = scalar_lea.vmem %s3, %s205
      %v207 = vld [vmem:[%s197] sm:$0xff]
      %v209 = vcombine.high %v207, %v207
      %211 = vst [vmem:[#allocation2] sm:$0xf] %v207
      %vm212 = vcmask 125952
      %213 = vst.msk [vmem:[#allocation2 + $0x8] sm:$0xf] %vm212, %v209
      %v214 = vcombine.low %v207, %v207
      %215 = vrot.lane.b32.xlu0 %v214, 127
      %v216 = vpop.permute.xlu0 %215
      %217 = vrot.lane.b32.xlu0 %v207, 127
      %v218 = vpop.permute.xlu0 %217
      %vm219 = vcmask 1039360
      %v220 = vsel %vm219, %v216, %v218
      %223 = vst [vmem:[#allocation2] sm:$0xf0] %v220
      %vm224 = vcmask 130052
      %225 = vst.msk [vmem:[#allocation2 + $0x8] sm:$0xf0] %vm224, %v218
      %226 = vrot.lane.b32.xlu0 %v207, 126
      %v227 = vpop.permute.xlu0 %226
      %228 = vrot.lane.b32.xlu0 %v209, 126
      %v229 = vpop.permute.xlu0 %228
      %vm230 = vcmask 1031168
      %v231 = vsel %vm230, %v227, %v229
      %234 = vst [vmem:[#allocation2 + $0x10] sm:$0xf] %v231
      %235 = vst.msk [vmem:[#allocation2 + $0x18] sm:$0xf] %vm212, %v229
      %236 = vrot.lane.b32.xlu0 %v214, 110
      %v237 = vpop.permute.xlu0 %236
      %238 = vrot.lane.b32.xlu0 %v207, 110
      %v239 = vpop.permute.xlu0 %238
      %vm240 = vcmask 900096
      %v241 = vsel %vm240, %v237, %v239
      %244 = vst [vmem:[#allocation2 + $0x10] sm:$0xf0] %v241
      %245 = vst.msk [vmem:[#allocation2 + $0x18] sm:$0xf0] %vm224, %v239
      %246 = vrot.lane.b32.xlu0 %v207, 109
      %v247 = vpop.permute.xlu0 %246
      %248 = vrot.lane.b32.xlu0 %v209, 109
      %v249 = vpop.permute.xlu0 %248
      %vm250 = vcmask 891904
      %v251 = vsel %vm250, %v247, %v249
      %254 = vst [vmem:[#allocation2 + $0x20] sm:$0xf] %v251
      %255 = vst.msk [vmem:[#allocation2 + $0x28] sm:$0xf] %vm212, %v249
      %256 = vrot.lane.b32.xlu0 %v214, 108
      %v257 = vpop.permute.xlu0 %256
      %258 = vrot.lane.b32.xlu0 %v207, 108
      %v259 = vpop.permute.xlu0 %258
      %vm260 = vcmask 883712
      %v261 = vsel %vm260, %v257, %v259
      %264 = vst [vmem:[#allocation2 + $0x20] sm:$0xf0] %v261
      %265 = vst.msk [vmem:[#allocation2 + $0x28] sm:$0xf0] %vm224, %v259
      %266 = vrot.lane.b32.xlu0 %v207, 92
      %v267 = vpop.permute.xlu0 %266
      %268 = vrot.lane.b32.xlu0 %v209, 92
      %v269 = vpop.permute.xlu0 %268
      %vm270 = vcmask 752640
      %v271 = vsel %vm270, %v267, %v269
      %274 = vst [vmem:[#allocation2 + $0x30] sm:$0xf] %v271
      %275 = vst.msk [vmem:[#allocation2 + $0x38] sm:$0xf] %vm212, %v269
      %276 = vrot.lane.b32.xlu0 %v214, 91
      %v277 = vpop.permute.xlu0 %276
      %278 = vrot.lane.b32.xlu0 %v207, 91
      %v279 = vpop.permute.xlu0 %278
      %vm280 = vcmask 744448
      %v281 = vsel %vm280, %v277, %v279
      %284 = vst [vmem:[#allocation2 + $0x30] sm:$0xf0] %v281
      %285 = vst.msk [vmem:[#allocation2 + $0x38] sm:$0xf0] %vm224, %v279
      %286 = vrot.lane.b32.xlu0 %v207, 90
      %v287 = vpop.permute.xlu0 %286
      %288 = vrot.lane.b32.xlu0 %v209, 90
      %v289 = vpop.permute.xlu0 %288
      %vm290 = vcmask 736256
      %v291 = vsel %vm290, %v287, %v289
      %294 = vst [vmem:[#allocation2 + $0x40] sm:$0xf] %v291
      %295 = vst.msk [vmem:[#allocation2 + $0x48] sm:$0xf] %vm212, %v289
      %v296 = vld [vmem:[%s1] sm:$0xff]
      %v297 = vld [vmem:[%s1 + $0x8] sm:$0xff]
      %v298 = vld [vmem:[%s1 + $0x10] sm:$0xff]
      %v299 = vld [vmem:[%s1 + $0x18] sm:$0xff]
      %v300 = vld [vmem:[#allocation2] sm:$0xff]
      %v301 = vld [vmem:[#allocation2 + $0x8] sm:$0xff]
      %v302 = vld [vmem:[#allocation2 + $0x10] sm:$0xff]
      %v303 = vld [vmem:[#allocation2 + $0x18] sm:$0xff]
      %v304 = vld [vmem:[#allocation2 + $0x20] sm:$0xff]
      %v305 = vld [vmem:[#allocation2 + $0x28] sm:$0xff]
      %v306 = vld [vmem:[#allocation2 + $0x30] sm:$0xff]
      %v307 = vld [vmem:[#allocation2 + $0x38] sm:$0xff]
      %v308 = vld [vmem:[#allocation2 + $0x40] sm:$0xf]
      %v309 = vld [vmem:[#allocation2 + $0x48] sm:$0xf]
      %v310 = vld [vmem:[%s2] sm:$0xff]
      %v311 = vld [vmem:[%s2 + $0x8] sm:$0xff]
      %v312 = vld [vmem:[%s2 + $0x10] sm:$0xff]
      %v313 = vld [vmem:[%s2 + $0x18] sm:$0xff]
      %315 = vset.pattern.permute.xlu0 0
      %316 = vperm.xlu0 %315, %v310
      %v317 = vpop.permute.xlu0 %316
      %320 = vset.pattern.permute.xlu0 0
      %321 = vperm.xlu0 %320, %v311
      %v322 = vpop.permute.xlu0 %321
      %325 = vset.pattern.permute.xlu0 0
      %326 = vperm.xlu0 %325, %v312
      %v327 = vpop.permute.xlu0 %326
      %330 = vset.pattern.permute.xlu0 0
      %331 = vperm.xlu0 %330, %v313
      %v332 = vpop.permute.xlu0 %331
      %vm334 = vcmask 293888
      %v336 = vsel %vm334, %v296, 0
      %v339 = vsel %vm334, %v297, 0
      %v342 = vsel %vm334, %v298, 0
      %v345 = vsel %vm334, %v299, 0
      %vm347 = vcmask 1043456
      %v349 = vsel %vm347, %v308, 0
      %v352 = vsel %vm347, %v309, 0
      %354 = vmatprep.subr.mxu0 0.0
      %355 = vmatpush1.msra.mxu0 0.0
      %356 = vmatprep.subr.mxu0 0.0
      %357 = vmatpush1.msra.mxu0 0.0
      %358 = vmatprep.subr.mxu0 0.0
      %359 = vmatpush1.msra.mxu0 0.0
      %360 = vmatprep.subr.mxu0 0.0
      %361 = vmatpush1.msra.mxu0 0.0
      %362 = vmatprep.subr.mxu0 0.0
      %363 = vmatpush1.msra.mxu0 0.0
      %364 = vmatprep.subr.mxu0 0.0
      %365 = vmatpush1.msra.mxu0 0.0
      %366 = vmatprep.subr.mxu0 0.0
      %367 = vmatpush1.msra.mxu0 0.0
      %368 = vmatprep.subr.mxu0 0.0
      %369 = vmatpush1.msra.mxu0 0.0
      %370 = vmatprep.subr.mxu0 0.0
      %371 = vmatpush1.msra.mxu0 0.0
      %372 = vmatprep.subr.mxu0 0.0
      %373 = vmatpush1.msra.mxu0 0.0
      %374 = vmatprep.subr.mxu0 0.0
      %375 = vmatpush1.msra.mxu0 0.0
      %376 = vmatprep.subr.mxu0 %v352
      %377 = vmatpush1.msra.mxu0 %v349
      %378 = vmatprep.subr.mxu0 %v307
      %379 = vmatpush1.msra.mxu0 %v306
      %380 = vmatprep.subr.mxu0 %v305
      %381 = vmatpush1.msra.mxu0 %v304
      %382 = vmatprep.subr.mxu0 %v303
      %383 = vmatpush1.msra.mxu0 %v302
      %384 = vmatprep.subr.mxu0 %v301
      %385 = vmatpush1.msra.mxu0 %v300
      %386 = vmatprep.subr.mxu0 0.0
      %387 = vmatpush2.msra.mxu0 0.0
      %388 = vmatprep.subr.mxu0 0.0
      %389 = vmatpush2.msra.mxu0 0.0
      %390 = vmatprep.subr.mxu0 0.0
      %391 = vmatpush2.msra.mxu0 0.0
      %392 = vmatprep.subr.mxu0 0.0
      %393 = vmatpush2.msra.mxu0 0.0
      %394 = vmatprep.subr.mxu0 0.0
      %395 = vmatpush2.msra.mxu0 0.0
      %396 = vmatprep.subr.mxu0 0.0
      %397 = vmatpush2.msra.mxu0 0.0
      %398 = vmatprep.subr.mxu0 0.0
      %399 = vmatpush2.msra.mxu0 0.0
      %400 = vmatprep.subr.mxu0 0.0
      %401 = vmatpush2.msra.mxu0 0.0
      %402 = vmatprep.subr.mxu0 0.0
      %403 = vmatpush2.msra.mxu0 0.0
      %404 = vmatprep.subr.mxu0 0.0
      %405 = vmatpush2.msra.mxu0 0.0
      %406 = vmatprep.subr.mxu0 0.0
      %407 = vmatpush2.msra.mxu0 0.0
      %408 = vmatprep.subr.mxu0 0.0
      %409 = vmatpush2.msra.mxu0 0.0
      %410 = vmatprep.subr.mxu0 0.0
      %411 = vmatpush2.msra.mxu0 0.0
      %412 = vmatprep.subr.mxu0 0.0
      %413 = vmatpush2.msra.mxu0 0.0
      %414 = vmatprep.subr.mxu0 0.0
      %415 = vmatpush2.msra.mxu0 0.0
      %416 = vmatprep.subr.mxu0 0.0
      %417 = vmatpush2.msra.mxu0 0.0
      %418 = vmatprep.mubr.f32.mxu0 0.0
      %419 = vmatmul.mubr.f32.gmra.mxu0 %v336
      %v420 = vpop.f32.mrf.mxu0
      %v421 = vadd.f32 %v317, %v420
      %v422 = vpop.f32.mrf.mxu0
      %v423 = vadd.f32 %v317, %v422
      %424 = vmatprep.mubr.f32.mxu0 0.0
      %425 = vmatmul.mubr.f32.gmra.mxu0 %v339
      %v426 = vpop.f32.mrf.mxu0
      %v427 = vadd.f32 %v322, %v426
      %v428 = vpop.f32.mrf.mxu0
      %v429 = vadd.f32 %v322, %v428
      %430 = vmatprep.mubr.f32.mxu0 0.0
      %431 = vmatmul.mubr.f32.gmra.mxu0 %v342
      %v432 = vpop.f32.mrf.mxu0
      %v433 = vadd.f32 %v327, %v432
      %v434 = vpop.f32.mrf.mxu0
      %v435 = vadd.f32 %v327, %v434
      %436 = vmatprep.mubr.f32.mxu0 0.0
      %437 = vmatmul.mubr.f32.gmra.mxu0 %v345
      %v438 = vpop.f32.mrf.mxu0
      %v439 = vadd.f32 %v332, %v438
      %v440 = vpop.f32.mrf.mxu0
      %v441 = vadd.f32 %v332, %v440
      %442 = vdwg.mxu0
      %443 = vst [vmem:[%s206] sm:$0xff] %v421
      %vm444 = vcmask 130048
      %445 = vst.msk [vmem:[%s206 + $0x8] sm:$0xff] %vm444, %v423
      %446 = vst [vmem:[%s206 + $0x10] sm:$0xff] %v427
      %447 = vst.msk [vmem:[%s206 + $0x18] sm:$0xff] %vm444, %v429
      %448 = vst [vmem:[%s206 + $0x20] sm:$0xff] %v433
      %449 = vst.msk [vmem:[%s206 + $0x28] sm:$0xff] %vm444, %v435
      %450 = vst [vmem:[%s206 + $0x30] sm:$0xff] %v439
      %451 = vst.msk [vmem:[%s206 + $0x38] sm:$0xff] %vm444, %v441
      %p452 = scmp.lt.s32.totalorder %s18, 1
      %s453 = scalar_select %p452, %s18, 1
      %p454 = scmp.lt.s32.totalorder %s19, 1
      %s455 = scalar_select %p454, %s19, 1
      %s456 = smul.addr %s455, 8
      %s457 = smul.addr %s453, 16
      %s458 = sadd.s32 %s456, %s457
      %s459 = smul.addr %s458, 8
      %s460 = scalar_lea.vmem %s3, %s459
      // Predicated region
      $region33: #{upsample_conv_forward.1} parent=31 // pred_check
        %p461 = pneg %p116
      $region34: #{upsample_conv_forward.1} parent=31 // pred_check_branch
        %463 = sbr.rel (%p461) target = $region36
      $region35: #{upsample_conv_forward.1} parent=31 // pred_region
        _
      $region36: #{upsample_conv_forward.1} parent=31 // pred_fallthru
        _
    $region32: #{upsample_conv_forward.1} parent=5 // pred_fallthru
      _
    %p464 = scmp.le.s32.totalorder 2, %s9
    // Predicated region
    $region37: #{upsample_conv_forward.1} parent=5 // pred_check
      %p465 = pneg %p464
    $region38: #{upsample_conv_forward.1} parent=5 // pred_check_branch
      %467 = sbr.rel (%p465) target = $region40
    $region39: #{upsample_conv_forward.1} parent=5 // pred_region
      %s468 = ssub.s32 %s9, 2
      // Predicated region
      $region41: #{upsample_conv_forward.1} parent=39 // pred_check
        %p469 = pneg %p122
      $region42: #{upsample_conv_forward.1} parent=39 // pred_check_branch
        %471 = sbr.rel (%p469) target = $region44
      $region43: #{upsample_conv_forward.1} parent=39 // pred_region
        %p472 = scmp.lt.s32.totalorder %s20, 1
        %s473 = scalar_select %p472, %s20, 1
        %p474 = scmp.lt.s32.totalorder %s21, 1
        %s475 = scalar_select %p474, %s21, 1
        %s476 = smul.addr %s475, 8
        %s477 = smul.addr %s473, 16
        %s478 = sadd.s32 %s476, %s477
        %s479 = smul.addr %s478, 8
        %s480 = scalar_lea.vmem %s3, %s479
      $region44: #{upsample_conv_forward.1} parent=39 // pred_fallthru
        _
    $region40: #{upsample_conv_forward.1} parent=5 // pred_fallthru
      _
  $region6: #{upsample_conv_forward.1} parent=0 // loop_footer
    %s13 = sadd.s32 1, %s9
  $region7: #{upsample_conv_forward.1} parent=0 // loop_footer_branch
    %8 = sbr.rel target = $region3
  $region8: #{upsample_conv_forward.1} parent=0 // loop_exit
    _

</llo_original>
